<compile_context>
chip_gen: v6e
topology: v6e:2x2x1
jax: 0.10.0
libtpu: 0.0.40
codegen_flags: <defaults>
</compile_context>

<pallas_src>
import jax
import jax.numpy as jnp
from jax.experimental import pallas as pl
from jax.experimental.pallas import tpu as pltpu


def _grad_kernel(w_ref, x_ref, o_ref):
    """o = sigmoid(x) * w[lane % 2] on one (row_tile, lane_width) slab tile."""
    x = x_ref[...].astype(jnp.float32)
    c = x.shape[1]

    # Per-lane weight as a single (1, c) row; the flattened row-major (N, 2) layout
    # interleaves the two features along lanes (c is even), so feature == lane % 2.
    # Broadcasting in the final multiply expands it — no full-tile intermediates.
    lane = jax.lax.broadcasted_iota(jnp.int32, (1, c), dimension=1)
    wv = jnp.where((lane % 2) == 0, w_ref[0], w_ref[1])

    # Numerically stable sigmoid (= d softplus / dx); exp rides the EUP slot.
    e = jnp.exp(-jnp.abs(x))
    sig = jnp.where(x >= 0.0, 1.0, e) / (1.0 + e)

    o_ref[...] = (sig * wv).astype(o_ref.dtype)


def _plan_layout(total, itemsize, target_block_bytes, min_steps):
    """Pick (lane_width, rows, row_tile, needs_pad) for a flat slab of `total` elems."""
    sub = max(8, 32 // itemsize)  # sublane granularity for the I/O dtype

    def _tile_for(c, rows):
        budget = (target_block_bytes // (c * itemsize)) // sub * sub
        tile = min(rows, max(sub, budget))
        if rows >= min_steps * sub:           # cap so the grid has >= min_steps steps
            tile = min(tile, (rows // min_steps) // sub * sub)
        return tile

    plans = []
    for c in (2048, 1024, 512, 256, 128):     # even + multiple of 128 (lane-parity trick)
        if total % c:
            continue
        rows = total // c
        if rows % sub:
            continue
        tile = _tile_for(c, rows)
        while rows % tile:                    # largest divisor of rows, multiple of sub
            tile -= sub
        steps = rows // tile
        bb = tile * c * itemsize
        key = (min(steps, min_steps),         # reach min_steps first (v7x 2-TC split)
               min(bb, target_block_bytes),   # then maximize block size up to budget
               steps % 2 == 0,                # prefer an even step count
               bb)
        plans.append((key, (c, rows, tile, False)))
    if plans:
        return max(plans, key=lambda p: p[0])[1]

    # Fallback (e.g. odd N): pad to a (rows, 512) slab.  Only path with wrapper pad.
    c = 512
    rows = pl.cdiv(pl.cdiv(total, c), sub) * sub
    tile = _tile_for(c, rows)
    rows = pl.cdiv(rows, tile) * tile
    return c, rows, tile, True


def simple_nn_grad(x, w, *, target_block_bytes=4 << 20, min_steps=4):
    """Gradient of sum(Linear(ShiftedSoftplus(x))) w.r.t. x, computed in Pallas.

    x: (N, 2), w: (1, 2) (Linear(2, 1) weight).  Returns (N, 2) in x.dtype.
    (The Linear bias drops out of d(sum y)/dx, so it is not an input here.)
    """
    n, f = x.shape
    assert f == 2, "SimpleNN.lin1 is Linear(2, 1)"
    out_dtype = x.dtype
    itemsize = jnp.dtype(out_dtype).itemsize
    total = n * f

    c, rows, row_tile, needs_pad = _plan_layout(total, itemsize, target_block_bytes,
                                                min_steps)
    padded_total = rows * c

    # Row-major flatten to a lane-dense (rows, c) slab; a layout no-op when aligned.
    xf = x.reshape(-1)
    if needs_pad:
        xf = jnp.pad(xf, (0, padded_total - total))
    xs = xf.reshape(rows, c)

    # Two weight scalars -> SMEM via scalar prefetch (no padded (1, 2) VMEM tile).
    w_scalars = w.reshape(-1).astype(jnp.float32)

    cost = pl.CostEstimate(
        flops=6 * padded_total,
        transcendentals=padded_total,
        bytes_accessed=2 * padded_total * itemsize,
    )

    out = pl.pallas_call(
        _grad_kernel,
        out_shape=jax.ShapeDtypeStruct((rows, c), out_dtype),
        grid_spec=pltpu.PrefetchScalarGridSpec(
            num_scalar_prefetch=1,
            grid=(rows // row_tile,),
            in_specs=[pl.BlockSpec((row_tile, c), lambda i, w_s: (i, 0))],
            out_specs=pl.BlockSpec((row_tile, c), lambda i, w_s: (i, 0)),
        ),
        compiler_params=pltpu.CompilerParams(
            dimension_semantics=("parallel",),     # shard grid across TCs on v7x
            vmem_limit_bytes=32 * 1024 * 1024,     # safe on v7x's 64 MiB VMEM
        ),
        cost_estimate=cost,
    )(w_scalars, xs)

    if needs_pad:
        return out.reshape(-1)[:total].reshape(n, f)
    return out.reshape(n, f)


def _reference_grad(x, w, b):
    # Pure-JAX reference using autodiff, mirroring the PyTorch module exactly.
    def fwd(xx):
        shift = jnp.log(2.0)
        u = jnp.log1p(jnp.exp(-jnp.sign(xx) * xx))
        v = jnp.maximum(xx, 0.0)          # torch.clamp_min(x, 0.0)
        y = u + v - shift
        y = y @ w.T + b
        return jnp.sum(y)
    return jax.grad(fwd)(x)


if __name__ == "__main__":
    key = jax.random.PRNGKey(0)
    kx, kw, kb = jax.random.split(key, 3)

    # Shapes consistent with Linear(2, 1): batch N, features 2.
    N, F = 2048, 2
    x = jax.random.normal(kx, (N, F), dtype=jnp.float32)

    # Deterministic Linear(2, 1) params (PyTorch-style uniform(-1/sqrt(2), 1/sqrt(2))).
    bound = 1.0 / jnp.sqrt(jnp.float32(F))
    w = jax.random.uniform(kw, (1, F), minval=-bound, maxval=bound, dtype=jnp.float32)
    b = jax.random.uniform(kb, (1,), minval=-bound, maxval=bound, dtype=jnp.float32)

    # Aligned batch: no wrapper pad/slice, multi-step pipelined grid.
    out = jax.block_until_ready(simple_nn_grad(x, w))
    ref = _reference_grad(x, w, b)
    assert out.shape == (N, F)
    assert jnp.allclose(out, ref, atol=1e-5, rtol=1e-5)

    # Misaligned batch exercises the padded fallback path.
    N2 = 1000
    x2 = jax.random.normal(kx, (N2, F), dtype=jnp.float32)
    out2 = jax.block_until_ready(simple_nn_grad(x2, w))
    ref2 = _reference_grad(x2, w, b)
    assert out2.shape == (N2, F)
    assert jnp.allclose(out2, ref2, atol=1e-5, rtol=1e-5)

    print("KERNEL_OK")
</pallas_src>

<mosaic_0001>
module attributes {stable_mosaic.version = 11 : i64} {
  func.func @_grad_kernel(%arg0: i32, %arg1: memref<2xf32, #tpu.memory_space<smem>>, %arg2: memref<8x128xf32, #tpu.memory_space<vmem>>, %arg3: memref<8x128xf32, #tpu.memory_space<vmem>>) attributes {dimension_semantics = [#tpu.dimension_semantics<parallel>], iteration_bounds = array<i64: 4>, scalar_prefetch = 1 : i64, scratch_operands = 0 : i64, tpu.core_type = #tpu.core_type<tc>, window_params = [{transform_indices = @transform_0, window_bounds = array<i64: 8, 128>}, {transform_indices = @transform_1, window_bounds = array<i64: 8, 128>}]} {
    %c0 = arith.constant 0 : index
    %c0_0 = arith.constant 0 : index
    %0 = vector.load %arg2[%c0, %c0_0] : memref<8x128xf32, #tpu.memory_space<vmem>>, vector<8x128xf32>
    %1 = tpu.iota {dimensions = array<i32: 1>} : vector<1x128xi32>
    %c2_i32 = arith.constant 2 : i32
    %c0_i32 = arith.constant 0 : i32
    %2 = arith.cmpi eq, %c2_i32, %c0_i32 : i32
    %c1_i32 = arith.constant 1 : i32
    %3 = arith.select %2, %c1_i32, %c2_i32 : i32
    %4 = vector.broadcast %3 : i32 to vector<1x128xi32>
    %5 = arith.remsi %1, %4 : vector<1x128xi32>
    %c0_i32_1 = arith.constant 0 : i32
    %6 = vector.broadcast %c0_i32_1 : i32 to vector<1x128xi32>
    %7 = arith.cmpi ne, %5, %6 : vector<1x128xi32>
    %c0_i32_2 = arith.constant 0 : i32
    %8 = vector.broadcast %c0_i32_2 : i32 to vector<1x128xi32>
    %9 = arith.cmpi slt, %5, %8 : vector<1x128xi32>
    %c0_i32_3 = arith.constant 0 : i32
    %10 = arith.cmpi slt, %3, %c0_i32_3 : i32
    %11 = vector.broadcast %10 : i1 to vector<1x128xi1>
    %12 = vector.broadcast %11 : vector<1x128xi1> to vector<1x128xi1>
    %13 = arith.xori %9, %12 : vector<1x128xi1>
    %14 = arith.andi %13, %7 : vector<1x128xi1>
    %15 = vector.broadcast %3 : i32 to vector<1x128xi32>
    %16 = arith.addi %5, %15 : vector<1x128xi32>
    %17 = arith.select %14, %16, %5 : vector<1x128xi1>, vector<1x128xi32>
    %c0_i32_4 = arith.constant 0 : i32
    %18 = vector.broadcast %c0_i32_4 : i32 to vector<1x128xi32>
    %19 = arith.cmpi eq, %17, %18 : vector<1x128xi32>
    %c0_5 = arith.constant 0 : index
    %20 = memref.load %arg1[%c0_5] : memref<2xf32, #tpu.memory_space<smem>>
    %c1 = arith.constant 1 : index
    %21 = memref.load %arg1[%c1] : memref<2xf32, #tpu.memory_space<smem>>
    %22 = vector.broadcast %20 : f32 to vector<1x128xf32>
    %23 = vector.broadcast %21 : f32 to vector<1x128xf32>
    %24 = arith.select %19, %22, %23 : vector<1x128xi1>, vector<1x128xf32>
    %25 = math.absf %0 : vector<8x128xf32>
    %cst = arith.constant 0.000000e+00 : f32
    %26 = vector.broadcast %cst : f32 to vector<8x128xf32>
    %27 = arith.subf %26, %25 : vector<8x128xf32>
    %28 = math.exp %27 : vector<8x128xf32>
    %cst_6 = arith.constant 0.000000e+00 : f32
    %29 = vector.broadcast %cst_6 : f32 to vector<8x128xf32>
    %30 = arith.cmpf oge, %0, %29 : vector<8x128xf32>
    %cst_7 = arith.constant 1.000000e+00 : f32
    %31 = vector.broadcast %cst_7 : f32 to vector<8x128xf32>
    %32 = arith.select %30, %31, %28 : vector<8x128xi1>, vector<8x128xf32>
    %cst_8 = arith.constant 1.000000e+00 : f32
    %33 = vector.broadcast %cst_8 : f32 to vector<8x128xf32>
    %34 = arith.addf %33, %28 : vector<8x128xf32>
    %35 = arith.divf %32, %34 : vector<8x128xf32>
    %36 = vector.broadcast %24 : vector<1x128xf32> to vector<8x128xf32>
    %37 = arith.mulf %35, %36 : vector<8x128xf32>
    %c0_9 = arith.constant 0 : index
    %c0_10 = arith.constant 0 : index
    %38 = vector.load %arg3[%c0_9, %c0_10] : memref<8x128xf32, #tpu.memory_space<vmem>>, vector<8x128xf32>
    tpu.vector_store %arg3[%c0_9, %c0_10], %37 {strides = array<i32>} : memref<8x128xf32, #tpu.memory_space<vmem>>, vector<8x128xf32>,
    return
  }
  func.func @transform_0(%arg0: i32, %arg1: memref<2xf32, #tpu.memory_space<smem>>) -> (i32, i32) {
    %c0_i32 = arith.constant 0 : i32
    %c0_i32_0 = arith.constant 0 : i32
    return %arg0, %c0_i32 : i32, i32
  }
  func.func @transform_1(%arg0: i32, %arg1: memref<2xf32, #tpu.memory_space<smem>>) -> (i32, i32) {
    %c0_i32 = arith.constant 0 : i32
    %c0_i32_0 = arith.constant 0 : i32
    return %arg0, %c0_i32 : i32, i32
  }
}

</mosaic_0001>

<llo_original>
// kernel: tpu_custom_call.1
$region0: #{tpu_custom_call.1}
  #allocation0 [shape = 'u32[]', space=smem, size = 0x4, offset = 0x4, fixed_abs, tag = 'smem constant byte address 0x4 - core index']
  #allocation1 [shape = 'u32[144,128]{1,0:T(1,128)}', space=vmem, size = 0x12000, scoped, tag = 'internal scratch']
  #allocation2 [shape = 's32[1]{0}', space=sflag, size = 0x4, scoped, tag = 'scoped memory for tpu_custom_call.1']
  #allocation3 [shape = 'u8[512]{0}', space=smem, size = 0x200, scoped, tag = 'prefetched SMEM operand 0']
  %s0 = inlined_call_operand.hbm [shape: f32[2], index: 0, kind: input, shape index: {}]
  %s1 = inlined_call_operand.hbm [shape: f32[32,128], index: 1, kind: input, shape index: {}]
  %s2 = inlined_call_operand.hbm [shape: f32[32,128], index: 2, kind: output, shape index: {}]
  %s3 = sld [smem:[#allocation0]]
  $region41: #{tpu_custom_call.1} parent=0
    _
  %s5 = ssub.s32 1, %s3
  %s6 = scalar_select 0, %s5, %s3
  %8 = dma.hbm_to_smem %s0, 16, [#allocation3], [#allocation2]
  %9 = dma.done [#allocation2], 16
  %10 = sfence
  $region1: #{tpu_custom_call.1} parent=0
    #allocation4 [shape = 'u8[8192]{0}', space=vmem, size = 0x2000, scoped, tag = 'input window, operand 1']
    #allocation5 [shape = 's32[2]{0}', space=sflag, size = 0x8, scoped, tag = 'scoped memory for tpu_custom_call.1']
    #allocation6 [shape = 's32[2]{0}', space=sflag, size = 0x8, scoped, tag = 'scoped memory for tpu_custom_call.1']
    #allocation7 [shape = 'u8[8192]{0}', space=vmem, size = 0x2000, scoped, tag = 'output window, operand 0']
    %11 = vsyncpa [#allocation5], 0
    %s12 = scalar_lea.sflag [#allocation5], 1
    %13 = vsyncpa %s12, 0
    %14 = vsyncpa [#allocation6], 0
    %s15 = scalar_lea.sflag [#allocation6], 1
    %16 = vsyncpa %s15, 0
    loop: start=0, step=1, limit=6
    $region2: #{tpu_custom_call.1} parent=1 // loop_pre_header
      _
    $region3: #{tpu_custom_call.1} parent=1 // loop_header
      %s18 = sphi 0, %s22
      %p19 = scmp.ge.s32.totalorder %s18, 6
      %s28 = sphi 0, %s30
      %s31 = sphi 0, %s28
      %s32 = sphi 0, %s31
      %s48 = sphi 0, %s32
      %s54 = sphi 0, %s56
      %s57 = sphi 0, %s54
      %s58 = sphi 0, %s57
      %s74 = sphi 0, %s58
    $region4: #{tpu_custom_call.1} parent=1 // loop_header_branch
      %21 = sbr.rel (%p19) target = $region8
    $region5: #{tpu_custom_call.1} parent=1 // loop_body
      %s23 = ssub.s32 %s18, 1
      %s24 = ssub.s32 %s18, 2
      %s25 = sadd.s32 %s18, 1
      %s26 = ssub.s32 %s18, %s25
      %p27 = scmp.eq.s32.totalorder %s26, 0
      %s29 = sadd.s32 %s28, 1
      %s30 = scalar_select %p27, %s28, %s29
      %p33 = pneg %p27
      %p34 = scmp.eq.s32.totalorder %s18, 3
      %p35 = por %p33, %p34
      %p36 = scmp.ne.s32.totalorder %s28, %s31
      %p37 = scmp.eq.s32.totalorder %s18, 0
      %p38 = por %p36, %p37
      %p39 = scmp.ne.s32.totalorder %s28, %s31
      %p40 = scmp.eq.s32.totalorder %s23, 3
      %p41 = por %p39, %p40
      %p42 = scmp.ne.s32.totalorder %s31, %s32
      %p43 = scmp.eq.s32.totalorder %s23, 0
      %p44 = por %p42, %p43
      %p45 = scmp.ne.s32.totalorder %s31, %s32
      %p46 = scmp.eq.s32.totalorder %s24, 3
      %p47 = por %p45, %p46
      %p49 = scmp.ne.s32.totalorder %s32, %s48
      %p50 = scmp.eq.s32.totalorder %s24, 0
      %p51 = por %p49, %p50
      %s52 = ssub.s32 %s18, %s25
      %p53 = scmp.eq.s32.totalorder %s52, 0
      %s55 = sadd.s32 %s54, 1
      %s56 = scalar_select %p53, %s54, %s55
      %p59 = pneg %p53
      %p60 = scmp.eq.s32.totalorder %s18, 3
      %p61 = por %p59, %p60
      %p62 = scmp.ne.s32.totalorder %s54, %s57
      %p63 = scmp.eq.s32.totalorder %s18, 0
      %p64 = por %p62, %p63
      %p65 = scmp.ne.s32.totalorder %s54, %s57
      %p66 = scmp.eq.s32.totalorder %s23, 3
      %p67 = por %p65, %p66
      %p68 = scmp.ne.s32.totalorder %s57, %s58
      %p69 = scmp.eq.s32.totalorder %s23, 0
      %p70 = por %p68, %p69
      %p71 = scmp.ne.s32.totalorder %s57, %s58
      %p72 = scmp.eq.s32.totalorder %s24, 3
      %p73 = por %p71, %p72
      %p75 = scmp.ne.s32.totalorder %s58, %s74
      %p76 = scmp.eq.s32.totalorder %s24, 0
      %p77 = por %p75, %p76
      %p78 = scmp.le.s32.totalorder 1, %s18
      %p79 = scmp.lt.s32.totalorder %s18, 5
      %p80 = pnand %p78, %p79
      %p81 = pneg %p80
      // Predicated region
      $region9: #{tpu_custom_call.1} parent=5 // pred_check
        _
      $region10: #{tpu_custom_call.1} parent=5 // pred_check_branch
        %83 = sbr.rel (%p80) target = $region12
      $region11: #{tpu_custom_call.1} parent=5 // pred_region
        %s84 = ssub.s32 %s18, 1
      $region12: #{tpu_custom_call.1} parent=5 // pred_fallthru
        _
      %p85 = scmp.lt.s32.totalorder %s18, 4
      // Predicated region
      $region13: #{tpu_custom_call.1} parent=5 // pred_check
        %p86 = pneg %p85
      $region14: #{tpu_custom_call.1} parent=5 // pred_check_branch
        %88 = sbr.rel (%p86) target = $region16
      $region15: #{tpu_custom_call.1} parent=5 // pred_region
        // Predicated region
        $region17: #{tpu_custom_call.1} parent=15 // pred_check
          %p89 = pneg %p38
        $region18: #{tpu_custom_call.1} parent=15 // pred_check_branch
          %91 = sbr.rel (%p89) target = $region20
        $region19: #{tpu_custom_call.1} parent=15 // pred_region
          %s92 = sand.u32 %s28, 1
          %s93 = scalar_lea.sflag [#allocation5], %s92
          %s94 = sand.u32 %s28, 1
          %s95 = smul.addr %s94, 8
          %s96 = scalar_lea.vmem [#allocation4], %s95
          %s98 = ssub.s32 128, 128
          %99 = vsyncadd %s93, %s98
          %s100 = smul.addr %s18, 128
          %s101 = scalar_lea.hbm %s1, %s100
          %s103 = sshll.u32 %s96, 4
          %s104 = int_to_ptr.vmem [resolvable:$true] %s103
          %106 = dma.hbm_to_vmem [thread:$0]  %s101, 128, %s104, %s93
        $region20: #{tpu_custom_call.1} parent=15 // pred_fallthru
          _
      $region16: #{tpu_custom_call.1} parent=5 // pred_fallthru
        _
      %p107 = scmp.le.s32.totalorder 1, %s18
      %p108 = scmp.lt.s32.totalorder %s18, 5
      %p109 = pnand %p107, %p108
      %p110 = pneg %p109
      // Predicated region
      $region21: #{tpu_custom_call.1} parent=5 // pred_check
        _
      $region22: #{tpu_custom_call.1} parent=5 // pred_check_branch
        %112 = sbr.rel (%p109) target = $region24
      $region23: #{tpu_custom_call.1} parent=5 // pred_region
        %s113 = ssub.s32 %s18, 1
        %s114 = sand.u32 %s31, 1
        %s115 = scalar_lea.sflag [#allocation5], %s114
        %s116 = sand.u32 %s31, 1
        %s117 = smul.addr %s116, 8
        %s118 = scalar_lea.vmem [#allocation4], %s117
        // Predicated region
        $region25: #{tpu_custom_call.1} parent=23 // pred_check
          %p119 = pneg %p44
        $region26: #{tpu_custom_call.1} parent=23 // pred_check_branch
          %121 = sbr.rel (%p119) target = $region28
        $region27: #{tpu_custom_call.1} parent=23 // pred_region
          %122 = dma.done %s115, 128
        $region28: #{tpu_custom_call.1} parent=23 // pred_fallthru
          _
        %s123 = sand.u32 %s31, 1
        %s124 = scalar_lea.sflag [#allocation5], %s123
        %s125 = sand.u32 %s31, 1
        %s126 = smul.addr %s125, 8
        %s127 = scalar_lea.vmem [#allocation4], %s126
        %p128 = pneg %p44
        %p129 = pneg %p41
        %p130 = pneg %p70
        %p131 = pneg %p67
        %s132 = sand.u32 %s57, 1
        %s133 = scalar_lea.sflag [#allocation6], %s132
        %s134 = sand.u32 %s57, 1
        %s135 = smul.addr %s134, 8
        %s136 = scalar_lea.vmem [#allocation7], %s135
        %v137 = vld [vmem:[%s118] sm:$0xff]
        %v138 = vlaneseq
        %v139 = vand.u32 %v138, 127
        %vm140 = vcmp.lt.s32.totalorder %v139, 0
        %v141 = vsub.s32 0, %v139
        %v142 = vsel %vm140, %v141, %v139
        %v143 = vshrl.u32 %v142, 1
        %v144 = vand.u32 %v142, 1
        %v145 = vsub.s32 0, %v144
        %v146 = vsel %vm140, %v145, %v144
        %vm147 = vcmp.ne.s32.totalorder %v146, 0
        %vm148 = vcmp.lt.s32.totalorder %v146, 0
        %vm149 = vmand %vm148, %vm147
        %v150 = vadd.s32 %v146, 2
        %v151 = vsel %vm149, %v150, %v146
        %vm152 = vcmp.eq.s32.totalorder %v151, 0
        %s153 = sld [smem:[#allocation3]]
        %s154 = sld [smem:[#allocation3 + $0x1]]
        %v155 = vstv %s153
        %v156 = vstv %s154
        %v157 = vsel %vm152, %v155, %v156
        %v158 = vand.u32 2147483647, %v137
        %v159 = vsub.f32 0.0, %v158
        %v160 = vmul.f32 %v159, 1.442695
        %v161 = vpow.pop %v160
        %vm162 = vcmp.ge.f32.partialorder %v137, 0.0
        %v163 = vsel %vm162, 1.0, %v161
        %v164 = vadd.f32 %v161, 1.0
        %v165 = vrcp.pop %v164
        %v166 = vmul.f32 %v163, %v165
        %v167 = vmul.f32 %v166, %v157
        %168 = vst [vmem:[%s136] sm:$0xff] %v167
        %s169 = sand.u32 %s57, 1
        %s170 = scalar_lea.sflag [#allocation6], %s169
        %s171 = sand.u32 %s57, 1
        %s172 = smul.addr %s171, 8
        %s173 = scalar_lea.vmem [#allocation7], %s172
        // Predicated region
        $region29: #{tpu_custom_call.1} parent=23 // pred_check
          %p174 = pneg %p67
        $region30: #{tpu_custom_call.1} parent=23 // pred_check_branch
          %176 = sbr.rel (%p174) target = $region32
        $region31: #{tpu_custom_call.1} parent=23 // pred_region
          %s178 = ssub.s32 128, 128
          %179 = vsyncadd %s170, %s178
          %s180 = smul.addr %s23, 128
          %s181 = scalar_lea.hbm %s2, %s180
          %s183 = sshll.u32 %s173, 4
          %s184 = int_to_ptr.vmem [resolvable:$true] %s183
          %186 = dma.vmem_to_hbm [thread:$0]  %s184, 128, %s181, %s170
        $region32: #{tpu_custom_call.1} parent=23 // pred_fallthru
          _
      $region24: #{tpu_custom_call.1} parent=5 // pred_fallthru
        _
      %p187 = scmp.le.s32.totalorder 2, %s18
      // Predicated region
      $region33: #{tpu_custom_call.1} parent=5 // pred_check
        %p188 = pneg %p187
      $region34: #{tpu_custom_call.1} parent=5 // pred_check_branch
        %190 = sbr.rel (%p188) target = $region36
      $region35: #{tpu_custom_call.1} parent=5 // pred_region
        %s191 = ssub.s32 %s18, 2
        // Predicated region
        $region37: #{tpu_custom_call.1} parent=35 // pred_check
          %p192 = pneg %p73
        $region38: #{tpu_custom_call.1} parent=35 // pred_check_branch
          %194 = sbr.rel (%p192) target = $region40
        $region39: #{tpu_custom_call.1} parent=35 // pred_region
          %s195 = sand.u32 %s58, 1
          %s196 = scalar_lea.sflag [#allocation6], %s195
          %s197 = sand.u32 %s58, 1
          %s198 = smul.addr %s197, 8
          %s199 = scalar_lea.vmem [#allocation7], %s198
          %200 = dma.done %s196, 128
        $region40: #{tpu_custom_call.1} parent=35 // pred_fallthru
          _
      $region36: #{tpu_custom_call.1} parent=5 // pred_fallthru
        _
    $region6: #{tpu_custom_call.1} parent=1 // loop_footer
      %s22 = sadd.s32 1, %s18
    $region7: #{tpu_custom_call.1} parent=1 // loop_footer_branch
      %17 = sbr.rel target = $region3
    $region8: #{tpu_custom_call.1} parent=1 // loop_exit
      _
    %201 = vsyncpa [#allocation5], 1
    %s202 = scalar_lea.sflag [#allocation5], 1
    %203 = vsyncpa %s202, 1
    %204 = vsyncpa [#allocation6], 1
    %s205 = scalar_lea.sflag [#allocation6], 1
    %206 = vsyncpa %s205, 1

</llo_original>
